<compile_context>
chip_gen: v5e
topology: v5e:2x2
jax: 0.10.0
libtpu: 0.0.40
codegen_flags: <defaults>
</compile_context>

<pallas_src>
import functools

import jax
import jax.numpy as jnp
from jax.experimental import pallas as pl
from jax.experimental.pallas import tpu as pltpu


def _rep_rows(x, k):
    """(R, T) -> (R*k, T): each row repeated k times consecutively."""
    r, t = x.shape
    return jnp.broadcast_to(x[:, None, :], (r, k, t)).reshape(r * k, t)


def _tile_rows(x, k):
    """(R, T) -> (k*R, T): whole block tiled k times."""
    r, t = x.shape
    return jnp.broadcast_to(x[None, :, :], (k, r, t)).reshape(k * r, t)


def _tensor_layer_kernel(patch_ref, w_ref, out_ref, *, tn, bond, bond_up, top_flag):
    # patch_ref: (tn, tn, 4*bond, TILE)          batch on lanes
    # w_ref    : (S*bond_up, S*bond**4)          block-diagonal transposed weights
    # out_ref  : (S*bond_up, TILE)               lane-dense flat output slab
    b2 = bond * bond
    s_cnt = tn * tn

    # Build local for every site with full-block ops; stack along sublanes.
    sites = []
    for m in range(tn):
        for n in range(tn):
            x = patch_ref[m, n]                              # (4*bond, TILE)
            a = x[0 * bond:1 * bond]                         # data[:,2m,2n,:]
            b = x[1 * bond:2 * bond]                         # data[:,2m,2n+1,:]
            c = x[2 * bond:3 * bond]                         # data[:,2m+1,2n,:]
            d = x[3 * bond:4 * bond]                         # data[:,2m+1,2n+1,:]
            ab = _rep_rows(a, bond) * _tile_rows(b, bond)    # row i*b+j = a_i*b_j
            cd = _rep_rows(c, bond) * _tile_rows(d, bond)    # row k*b+l = c_k*d_l
            # row ((i*b+j)*b+k)*b+l  == row-major (i,j,k,l), matches weight flatten
            sites.append(_rep_rows(ab, b2) * _tile_rows(cd, b2))   # (bond^4, TILE)
    local_all = jnp.concatenate(sites, axis=0)               # (S*bond^4, TILE)

    # One fused (block-diagonal) matmul for all sites: (S*up, S*b^4) @ (S*b^4, T).
    temp = jnp.dot(w_ref[...], local_all,
                   preferred_element_type=jnp.float32)       # (S*bond_up, TILE)

    if top_flag == 0:
        t3 = temp.reshape(s_cnt, bond_up, temp.shape[-1])
        ss = jnp.sum(t3 * t3, axis=1, keepdims=True)         # (S, 1, TILE)
        # == temp / max(||temp||_2, 1e-12)  (F.normalize semantics), via EUP rsqrt.
        inv = jax.lax.rsqrt(jnp.maximum(ss, 1e-24))
        temp = (t3 * inv).reshape(temp.shape)

    out_ref[...] = temp.astype(out_ref.dtype)                # single unmasked store


def tensor_layer_forward(data, weight, *, top_flag):
    """data: (Num, 2*tn, 2*tn, bond); weight: (tn, tn, b, b, b, b, bond_up)."""
    num, H, W, bond = data.shape
    tn = H // 2
    bond_up = weight.shape[-1]
    s_cnt = tn * tn
    b4 = bond ** 4

    # --- batch tiling: TILE capped at 256 (vreg pressure of the local block);
    # 128 for tiny batches.  grid = num_pad // tile, all steps independent. ---
    tile = 128 if num <= 128 else 256
    num_pad = ((num + tile - 1) // tile) * tile

    # --- single input relayout (pad first so pad+transpose fuse in one pass):
    # (N, m, r, n, c, i) -> (m, n, r, c, i, N) -> (tn, tn, 4*bond, N_pad) ---
    x = data.astype(jnp.float32)
    if num_pad != num:
        x = jnp.pad(x, ((0, num_pad - num), (0, 0), (0, 0), (0, 0)))
    patches = x.reshape(num_pad, tn, 2, tn, 2, bond)
    patches = patches.transpose(1, 3, 2, 4, 5, 0).reshape(tn, tn, 4 * bond, num_pad)

    # --- block-diagonal transposed weight: block s = weight[m,n]^T  (tiny, resident)
    w_t = weight.reshape(s_cnt, b4, bond_up).transpose(0, 2, 1).astype(jnp.float32)
    eye = jnp.eye(s_cnt, dtype=jnp.float32)
    w_bd = (eye[:, None, :, None] * w_t[:, :, None, :]).reshape(s_cnt * bond_up,
                                                                s_cnt * b4)

    kernel = functools.partial(_tensor_layer_kernel, tn=tn, bond=bond,
                               bond_up=bond_up, top_flag=top_flag)

    out = pl.pallas_call(
        kernel,
        out_shape=jax.ShapeDtypeStruct((s_cnt * bond_up, num_pad), jnp.float32),
        grid_spec=pltpu.PrefetchScalarGridSpec(
            num_scalar_prefetch=0,
            grid=(num_pad // tile,),
            in_specs=[
                # batch-tiled patches: (4*bond sublanes x TILE lanes) per site
                pl.BlockSpec((tn, tn, 4 * bond, tile), lambda t: (0, 0, 0, t)),
                # full block-diagonal weight, constant block index -> resident
                pl.BlockSpec((s_cnt * bond_up, s_cnt * b4), lambda t: (0, 0)),
            ],
            out_specs=pl.BlockSpec((s_cnt * bond_up, tile), lambda t: (0, t)),
        ),
        compiler_params=pltpu.CompilerParams(
            dimension_semantics=("parallel",)),
    )(patches, w_bd)

    # --- single output relayout back to the PyTorch layout (Num, tn, tn, up).
    # (If this layer is stacked, the lane-major (S*up, Num) slab could be consumed
    # directly and this relayout dropped.) ---
    return out[:, :num].reshape(tn, tn, bond_up, num).transpose(3, 0, 1, 2)


def tensor_layer_ref(data, weight, top_flag):
    """Pure-JAX reference mirroring the PyTorch loop."""
    num, H, W, bond = data.shape
    tn = H // 2
    rows = []
    for m in range(tn):
        cols = []
        for n in range(tn):
            a = data[:, 2 * m, 2 * n, :]
            b = data[:, 2 * m, 2 * n + 1, :]
            c = data[:, 2 * m + 1, 2 * n, :]
            d = data[:, 2 * m + 1, 2 * n + 1, :]
            local = jnp.einsum('mi,mj,mk,ml->mijkl', a, b, c, d)
            temp = jnp.einsum('mijkl,ijkln->mn', local, weight[m, n])
            if top_flag == 0:
                nrm = jnp.linalg.norm(temp, axis=1, keepdims=True)
                temp = temp / jnp.maximum(nrm, 1e-12)
            cols.append(temp)
        rows.append(jnp.stack(cols, axis=1))
    return jnp.stack(rows, axis=1)


if __name__ == "__main__":
    # Shapes consistent with the module: tn_size=2, bond_down=2, bond_up=4.
    tn_size, bond_down, bond_up = 2, 2, 4

    key = jax.random.PRNGKey(0)
    k_d0, k_d1, k_w = jax.random.split(key, 3)
    weight = jax.random.uniform(
        k_w,
        (tn_size, tn_size, bond_down, bond_down, bond_down, bond_down, bond_up),
        dtype=jnp.float32)

    # Case 1: lane-aligned batch, normalized output (top_flag=0).
    data0 = jax.random.uniform(k_d0, (256, 2 * tn_size, 2 * tn_size, bond_down),
                               dtype=jnp.float32)
    out0 = jax.block_until_ready(tensor_layer_forward(data0, weight, top_flag=0))
    ref0 = tensor_layer_ref(data0, weight, 0)
    assert out0.shape == (256, tn_size, tn_size, bond_up)
    assert jnp.allclose(out0, ref0, rtol=1e-5, atol=1e-5), "mismatch (top_flag=0)"

    # Case 2: ragged batch (exercises lane padding), raw output (top_flag=1).
    data1 = jax.random.uniform(k_d1, (200, 2 * tn_size, 2 * tn_size, bond_down),
                               dtype=jnp.float32)
    out1 = jax.block_until_ready(tensor_layer_forward(data1, weight, top_flag=1))
    ref1 = tensor_layer_ref(data1, weight, 1)
    assert out1.shape == (200, tn_size, tn_size, bond_up)
    assert jnp.allclose(out1, ref1, rtol=1e-5, atol=1e-5), "mismatch (top_flag=1)"

    print("KERNEL_OK")
</pallas_src>

<mosaic_0001>
module attributes {stable_mosaic.version = 11 : i64} {
  func.func @_tensor_layer_kernel(%arg0: i32, %arg1: memref<2x2x8x256xf32, #tpu.memory_space<vmem>>, %arg2: memref<16x64xf32, #tpu.memory_space<vmem>>, %arg3: memref<16x256xf32, #tpu.memory_space<vmem>>) attributes {dimension_semantics = [#tpu.dimension_semantics<parallel>], iteration_bounds = array<i64: 1>, scalar_prefetch = 0 : i64, scratch_operands = 0 : i64, tpu.core_type = #tpu.core_type<tc>, window_params = [{transform_indices = @transform_0, window_bounds = array<i64: 2, 2, 8, 256>}, {pipeline_mode = #tpu.pipeline_mode<synchronous>, transform_indices = @transform_1, window_bounds = array<i64: 16, 64>}, {transform_indices = @transform_2, window_bounds = array<i64: 16, 256>}]} {
    %c0 = arith.constant 0 : index
    %c0_0 = arith.constant 0 : index
    %c0_1 = arith.constant 0 : index
    %c0_2 = arith.constant 0 : index
    %0 = vector.load %arg1[%c0, %c0_0, %c0_1, %c0_2] : memref<2x2x8x256xf32, #tpu.memory_space<vmem>>, vector<1x1x8x256xf32>
    %1 = vector.shape_cast %0 : vector<1x1x8x256xf32> to vector<8x256xf32>
    %2 = vector.extract_strided_slice %1 {offsets = [0, 0], sizes = [2, 256], strides = [1, 1]} : vector<8x256xf32> to vector<2x256xf32>
    %3 = vector.extract_strided_slice %1 {offsets = [2, 0], sizes = [2, 256], strides = [1, 1]} : vector<8x256xf32> to vector<2x256xf32>
    %4 = vector.extract_strided_slice %1 {offsets = [4, 0], sizes = [2, 256], strides = [1, 1]} : vector<8x256xf32> to vector<2x256xf32>
    %5 = vector.extract_strided_slice %1 {offsets = [6, 0], sizes = [2, 256], strides = [1, 1]} : vector<8x256xf32> to vector<2x256xf32>
    %6 = vector.shape_cast %2 : vector<2x256xf32> to vector<2x1x256xf32>
    %7 = vector.shape_cast %6 : vector<2x1x256xf32> to vector<2x1x256xf32>
    %8 = vector.broadcast %7 : vector<2x1x256xf32> to vector<2x2x256xf32>
    %9 = vector.shape_cast %8 : vector<2x2x256xf32> to vector<4x256xf32>
    %10 = vector.shape_cast %3 : vector<2x256xf32> to vector<1x2x256xf32>
    %11 = vector.shape_cast %10 : vector<1x2x256xf32> to vector<1x2x256xf32>
    %12 = vector.broadcast %11 : vector<1x2x256xf32> to vector<2x2x256xf32>
    %13 = vector.shape_cast %12 : vector<2x2x256xf32> to vector<4x256xf32>
    %14 = arith.mulf %9, %13 : vector<4x256xf32>
    %15 = vector.shape_cast %4 : vector<2x256xf32> to vector<2x1x256xf32>
    %16 = vector.shape_cast %15 : vector<2x1x256xf32> to vector<2x1x256xf32>
    %17 = vector.broadcast %16 : vector<2x1x256xf32> to vector<2x2x256xf32>
    %18 = vector.shape_cast %17 : vector<2x2x256xf32> to vector<4x256xf32>
    %19 = vector.shape_cast %5 : vector<2x256xf32> to vector<1x2x256xf32>
    %20 = vector.shape_cast %19 : vector<1x2x256xf32> to vector<1x2x256xf32>
    %21 = vector.broadcast %20 : vector<1x2x256xf32> to vector<2x2x256xf32>
    %22 = vector.shape_cast %21 : vector<2x2x256xf32> to vector<4x256xf32>
    %23 = arith.mulf %18, %22 : vector<4x256xf32>
    %24 = vector.shape_cast %14 : vector<4x256xf32> to vector<4x1x256xf32>
    %25 = vector.shape_cast %24 : vector<4x1x256xf32> to vector<4x1x256xf32>
    %26 = vector.broadcast %25 : vector<4x1x256xf32> to vector<4x4x256xf32>
    %27 = vector.shape_cast %26 : vector<4x4x256xf32> to vector<16x256xf32>
    %28 = vector.shape_cast %23 : vector<4x256xf32> to vector<1x4x256xf32>
    %29 = vector.shape_cast %28 : vector<1x4x256xf32> to vector<1x4x256xf32>
    %30 = vector.broadcast %29 : vector<1x4x256xf32> to vector<4x4x256xf32>
    %31 = vector.shape_cast %30 : vector<4x4x256xf32> to vector<16x256xf32>
    %32 = arith.mulf %27, %31 : vector<16x256xf32>
    %c0_3 = arith.constant 0 : index
    %c1 = arith.constant 1 : index
    %c0_4 = arith.constant 0 : index
    %c0_5 = arith.constant 0 : index
    %33 = vector.load %arg1[%c0_3, %c1, %c0_4, %c0_5] : memref<2x2x8x256xf32, #tpu.memory_space<vmem>>, vector<1x1x8x256xf32>
    %34 = vector.shape_cast %33 : vector<1x1x8x256xf32> to vector<8x256xf32>
    %35 = vector.extract_strided_slice %34 {offsets = [0, 0], sizes = [2, 256], strides = [1, 1]} : vector<8x256xf32> to vector<2x256xf32>
    %36 = vector.extract_strided_slice %34 {offsets = [2, 0], sizes = [2, 256], strides = [1, 1]} : vector<8x256xf32> to vector<2x256xf32>
    %37 = vector.extract_strided_slice %34 {offsets = [4, 0], sizes = [2, 256], strides = [1, 1]} : vector<8x256xf32> to vector<2x256xf32>
    %38 = vector.extract_strided_slice %34 {offsets = [6, 0], sizes = [2, 256], strides = [1, 1]} : vector<8x256xf32> to vector<2x256xf32>
    %39 = vector.shape_cast %35 : vector<2x256xf32> to vector<2x1x256xf32>
    %40 = vector.shape_cast %39 : vector<2x1x256xf32> to vector<2x1x256xf32>
    %41 = vector.broadcast %40 : vector<2x1x256xf32> to vector<2x2x256xf32>
    %42 = vector.shape_cast %41 : vector<2x2x256xf32> to vector<4x256xf32>
    %43 = vector.shape_cast %36 : vector<2x256xf32> to vector<1x2x256xf32>
    %44 = vector.shape_cast %43 : vector<1x2x256xf32> to vector<1x2x256xf32>
    %45 = vector.broadcast %44 : vector<1x2x256xf32> to vector<2x2x256xf32>
    %46 = vector.shape_cast %45 : vector<2x2x256xf32> to vector<4x256xf32>
    %47 = arith.mulf %42, %46 : vector<4x256xf32>
    %48 = vector.shape_cast %37 : vector<2x256xf32> to vector<2x1x256xf32>
    %49 = vector.shape_cast %48 : vector<2x1x256xf32> to vector<2x1x256xf32>
    %50 = vector.broadcast %49 : vector<2x1x256xf32> to vector<2x2x256xf32>
    %51 = vector.shape_cast %50 : vector<2x2x256xf32> to vector<4x256xf32>
    %52 = vector.shape_cast %38 : vector<2x256xf32> to vector<1x2x256xf32>
    %53 = vector.shape_cast %52 : vector<1x2x256xf32> to vector<1x2x256xf32>
    %54 = vector.broadcast %53 : vector<1x2x256xf32> to vector<2x2x256xf32>
    %55 = vector.shape_cast %54 : vector<2x2x256xf32> to vector<4x256xf32>
    %56 = arith.mulf %51, %55 : vector<4x256xf32>
    %57 = vector.shape_cast %47 : vector<4x256xf32> to vector<4x1x256xf32>
    %58 = vector.shape_cast %57 : vector<4x1x256xf32> to vector<4x1x256xf32>
    %59 = vector.broadcast %58 : vector<4x1x256xf32> to vector<4x4x256xf32>
    %60 = vector.shape_cast %59 : vector<4x4x256xf32> to vector<16x256xf32>
    %61 = vector.shape_cast %56 : vector<4x256xf32> to vector<1x4x256xf32>
    %62 = vector.shape_cast %61 : vector<1x4x256xf32> to vector<1x4x256xf32>
    %63 = vector.broadcast %62 : vector<1x4x256xf32> to vector<4x4x256xf32>
    %64 = vector.shape_cast %63 : vector<4x4x256xf32> to vector<16x256xf32>
    %65 = arith.mulf %60, %64 : vector<16x256xf32>
    %c1_6 = arith.constant 1 : index
    %c0_7 = arith.constant 0 : index
    %c0_8 = arith.constant 0 : index
    %c0_9 = arith.constant 0 : index
    %66 = vector.load %arg1[%c1_6, %c0_7, %c0_8, %c0_9] : memref<2x2x8x256xf32, #tpu.memory_space<vmem>>, vector<1x1x8x256xf32>
    %67 = vector.shape_cast %66 : vector<1x1x8x256xf32> to vector<8x256xf32>
    %68 = vector.extract_strided_slice %67 {offsets = [0, 0], sizes = [2, 256], strides = [1, 1]} : vector<8x256xf32> to vector<2x256xf32>
    %69 = vector.extract_strided_slice %67 {offsets = [2, 0], sizes = [2, 256], strides = [1, 1]} : vector<8x256xf32> to vector<2x256xf32>
    %70 = vector.extract_strided_slice %67 {offsets = [4, 0], sizes = [2, 256], strides = [1, 1]} : vector<8x256xf32> to vector<2x256xf32>
    %71 = vector.extract_strided_slice %67 {offsets = [6, 0], sizes = [2, 256], strides = [1, 1]} : vector<8x256xf32> to vector<2x256xf32>
    %72 = vector.shape_cast %68 : vector<2x256xf32> to vector<2x1x256xf32>
    %73 = vector.shape_cast %72 : vector<2x1x256xf32> to vector<2x1x256xf32>
    %74 = vector.broadcast %73 : vector<2x1x256xf32> to vector<2x2x256xf32>
    %75 = vector.shape_cast %74 : vector<2x2x256xf32> to vector<4x256xf32>
    %76 = vector.shape_cast %69 : vector<2x256xf32> to vector<1x2x256xf32>
    %77 = vector.shape_cast %76 : vector<1x2x256xf32> to vector<1x2x256xf32>
    %78 = vector.broadcast %77 : vector<1x2x256xf32> to vector<2x2x256xf32>
    %79 = vector.shape_cast %78 : vector<2x2x256xf32> to vector<4x256xf32>
    %80 = arith.mulf %75, %79 : vector<4x256xf32>
    %81 = vector.shape_cast %70 : vector<2x256xf32> to vector<2x1x256xf32>
    %82 = vector.shape_cast %81 : vector<2x1x256xf32> to vector<2x1x256xf32>
    %83 = vector.broadcast %82 : vector<2x1x256xf32> to vector<2x2x256xf32>
    %84 = vector.shape_cast %83 : vector<2x2x256xf32> to vector<4x256xf32>
    %85 = vector.shape_cast %71 : vector<2x256xf32> to vector<1x2x256xf32>
    %86 = vector.shape_cast %85 : vector<1x2x256xf32> to vector<1x2x256xf32>
    %87 = vector.broadcast %86 : vector<1x2x256xf32> to vector<2x2x256xf32>
    %88 = vector.shape_cast %87 : vector<2x2x256xf32> to vector<4x256xf32>
    %89 = arith.mulf %84, %88 : vector<4x256xf32>
    %90 = vector.shape_cast %80 : vector<4x256xf32> to vector<4x1x256xf32>
    %91 = vector.shape_cast %90 : vector<4x1x256xf32> to vector<4x1x256xf32>
    %92 = vector.broadcast %91 : vector<4x1x256xf32> to vector<4x4x256xf32>
    %93 = vector.shape_cast %92 : vector<4x4x256xf32> to vector<16x256xf32>
    %94 = vector.shape_cast %89 : vector<4x256xf32> to vector<1x4x256xf32>
    %95 = vector.shape_cast %94 : vector<1x4x256xf32> to vector<1x4x256xf32>
    %96 = vector.broadcast %95 : vector<1x4x256xf32> to vector<4x4x256xf32>
    %97 = vector.shape_cast %96 : vector<4x4x256xf32> to vector<16x256xf32>
    %98 = arith.mulf %93, %97 : vector<16x256xf32>
    %c1_10 = arith.constant 1 : index
    %c1_11 = arith.constant 1 : index
    %c0_12 = arith.constant 0 : index
    %c0_13 = arith.constant 0 : index
    %99 = vector.load %arg1[%c1_10, %c1_11, %c0_12, %c0_13] : memref<2x2x8x256xf32, #tpu.memory_space<vmem>>, vector<1x1x8x256xf32>
    %100 = vector.shape_cast %99 : vector<1x1x8x256xf32> to vector<8x256xf32>
    %101 = vector.extract_strided_slice %100 {offsets = [0, 0], sizes = [2, 256], strides = [1, 1]} : vector<8x256xf32> to vector<2x256xf32>
    %102 = vector.extract_strided_slice %100 {offsets = [2, 0], sizes = [2, 256], strides = [1, 1]} : vector<8x256xf32> to vector<2x256xf32>
    %103 = vector.extract_strided_slice %100 {offsets = [4, 0], sizes = [2, 256], strides = [1, 1]} : vector<8x256xf32> to vector<2x256xf32>
    %104 = vector.extract_strided_slice %100 {offsets = [6, 0], sizes = [2, 256], strides = [1, 1]} : vector<8x256xf32> to vector<2x256xf32>
    %105 = vector.shape_cast %101 : vector<2x256xf32> to vector<2x1x256xf32>
    %106 = vector.shape_cast %105 : vector<2x1x256xf32> to vector<2x1x256xf32>
    %107 = vector.broadcast %106 : vector<2x1x256xf32> to vector<2x2x256xf32>
    %108 = vector.shape_cast %107 : vector<2x2x256xf32> to vector<4x256xf32>
    %109 = vector.shape_cast %102 : vector<2x256xf32> to vector<1x2x256xf32>
    %110 = vector.shape_cast %109 : vector<1x2x256xf32> to vector<1x2x256xf32>
    %111 = vector.broadcast %110 : vector<1x2x256xf32> to vector<2x2x256xf32>
    %112 = vector.shape_cast %111 : vector<2x2x256xf32> to vector<4x256xf32>
    %113 = arith.mulf %108, %112 : vector<4x256xf32>
    %114 = vector.shape_cast %103 : vector<2x256xf32> to vector<2x1x256xf32>
    %115 = vector.shape_cast %114 : vector<2x1x256xf32> to vector<2x1x256xf32>
    %116 = vector.broadcast %115 : vector<2x1x256xf32> to vector<2x2x256xf32>
    %117 = vector.shape_cast %116 : vector<2x2x256xf32> to vector<4x256xf32>
    %118 = vector.shape_cast %104 : vector<2x256xf32> to vector<1x2x256xf32>
    %119 = vector.shape_cast %118 : vector<1x2x256xf32> to vector<1x2x256xf32>
    %120 = vector.broadcast %119 : vector<1x2x256xf32> to vector<2x2x256xf32>
    %121 = vector.shape_cast %120 : vector<2x2x256xf32> to vector<4x256xf32>
    %122 = arith.mulf %117, %121 : vector<4x256xf32>
    %123 = vector.shape_cast %113 : vector<4x256xf32> to vector<4x1x256xf32>
    %124 = vector.shape_cast %123 : vector<4x1x256xf32> to vector<4x1x256xf32>
    %125 = vector.broadcast %124 : vector<4x1x256xf32> to vector<4x4x256xf32>
    %126 = vector.shape_cast %125 : vector<4x4x256xf32> to vector<16x256xf32>
    %127 = vector.shape_cast %122 : vector<4x256xf32> to vector<1x4x256xf32>
    %128 = vector.shape_cast %127 : vector<1x4x256xf32> to vector<1x4x256xf32>
    %129 = vector.broadcast %128 : vector<1x4x256xf32> to vector<4x4x256xf32>
    %130 = vector.shape_cast %129 : vector<4x4x256xf32> to vector<16x256xf32>
    %131 = arith.mulf %126, %130 : vector<16x256xf32>
    %132 = tpu.concatenate %32, %65, %98, %131 in 0 : vector<16x256xf32>, vector<16x256xf32>, vector<16x256xf32>, vector<16x256xf32> -> vector<64x256xf32>
    %c0_14 = arith.constant 0 : index
    %c0_15 = arith.constant 0 : index
    %133 = vector.load %arg2[%c0_14, %c0_15] : memref<16x64xf32, #tpu.memory_space<vmem>>, vector<16x64xf32>
    %cst = arith.constant dense<0.000000e+00> : vector<16x256xf32>
    %134 = tpu.matmul %133, %132, %cst {dimension_numbers = #tpu.dot_dimension_numbers<[1], [0], [0], [1], [0, 0, 1, 1], [], []>} : vector<16x64xf32>, vector<64x256xf32>, vector<16x256xf32> -> vector<16x256xf32>
    %135 = vector.shape_cast %134 : vector<16x256xf32> to vector<4x4x256xf32>
    %136 = arith.mulf %135, %135 : vector<4x4x256xf32>
    %cst_16 = arith.constant dense<0.000000e+00> : vector<4x256xf32>
    %137 = vector.multi_reduction <add>, %136, %cst_16 [1] : vector<4x4x256xf32> to vector<4x256xf32>
    %138 = vector.shape_cast %137 : vector<4x256xf32> to vector<4x1x256xf32>
    %cst_17 = arith.constant 1.000000e-24 : f32
    %139 = vector.broadcast %cst_17 : f32 to vector<4x1x256xf32>
    %140 = arith.maximumf %138, %139 : vector<4x1x256xf32>
    %141 = math.rsqrt %140 : vector<4x1x256xf32>
    %142 = vector.broadcast %141 : vector<4x1x256xf32> to vector<4x4x256xf32>
    %143 = arith.mulf %135, %142 : vector<4x4x256xf32>
    %144 = vector.shape_cast %143 : vector<4x4x256xf32> to vector<16x256xf32>
    %c0_18 = arith.constant 0 : index
    %c0_19 = arith.constant 0 : index
    %145 = vector.load %arg3[%c0_18, %c0_19] : memref<16x256xf32, #tpu.memory_space<vmem>>, vector<16x256xf32>
    tpu.vector_store %arg3[%c0_18, %c0_19], %144 {strides = array<i32>} : memref<16x256xf32, #tpu.memory_space<vmem>>, vector<16x256xf32>,
    return
  }
  func.func @transform_0(%arg0: i32) -> (i32, i32, i32, i32) {
    %c0_i32 = arith.constant 0 : i32
    %c0_i32_0 = arith.constant 0 : i32
    %c0_i32_1 = arith.constant 0 : i32
    %c0_i32_2 = arith.constant 0 : i32
    return %c0_i32, %c0_i32_0, %c0_i32_1, %arg0 : i32, i32, i32, i32
  }
  func.func @transform_1(%arg0: i32) -> (i32, i32) {
    %c0_i32 = arith.constant 0 : i32
    %c0_i32_0 = arith.constant 0 : i32
    %c0_i32_1 = arith.constant 0 : i32
    return %c0_i32, %c0_i32_0 : i32, i32
  }
  func.func @transform_2(%arg0: i32) -> (i32, i32) {
    %c0_i32 = arith.constant 0 : i32
    %c0_i32_0 = arith.constant 0 : i32
    return %c0_i32, %arg0 : i32, i32
  }
}

</mosaic_0001>

<llo_original>
// kernel: tpu_custom_call.1
$region0: #{tpu_custom_call.1}
  #allocation0 [shape = 'u32[]', space=smem, size = 0x4, offset = 0x4, fixed_abs, tag = 'smem constant byte address 0x4 - core index']
  #allocation1 [shape = 'u32[72,128]{1,0:T(1,128)}', space=vmem, size = 0x9000, scoped, tag = 'internal scratch']
  %s0 = inlined_call_operand.hbm [shape: f32[2,2,8,256], index: 0, kind: input, shape index: {}]
  %s1 = inlined_call_operand.hbm [shape: f32[16,64], index: 1, kind: input, shape index: {}]
  %s2 = inlined_call_operand.hbm [shape: f32[16,256], index: 2, kind: output, shape index: {}]
  %s3 = sld [smem:[#allocation0]]
  $region26: #{tpu_custom_call.1} parent=0
    _
  %s5 = ssub.s32 1, %s3
  %s6 = scalar_select 0, %s5, %s3
  $region1: #{tpu_custom_call.1} parent=0
    #allocation2 [shape = 'u8[32768]{0}', space=vmem, size = 0x8000, scoped, tag = 'input window, operand 0, single buffered']
    #allocation3 [shape = 's32[1]{0}', space=sflag, size = 0x4, scoped, tag = 'scoped memory for tpu_custom_call.1']
    #allocation4 [shape = 's32[1]{0}', space=sflag, size = 0x4, scoped, tag = 'scoped memory for tpu_custom_call.1']
    #allocation5 [shape = 'u8[8192]{0}', space=vmem, size = 0x2000, scoped, tag = 'input window, operand 1, single buffered']
    #allocation6 [shape = 's32[1]{0}', space=sflag, size = 0x4, scoped, tag = 'scoped memory for tpu_custom_call.1']
    #allocation7 [shape = 'u8[16384]{0}', space=vmem, size = 0x4000, scoped, tag = 'output window, operand 0, single buffered']
    %7 = vsyncpa [#allocation3], 0
    %8 = vsyncpa [#allocation6], 0
    %9 = vsyncpa [#allocation4], 0
    // Predicated region
    $region2: #{tpu_custom_call.1} parent=1 // pred_check
      _
    $region3: #{tpu_custom_call.1} parent=1 // pred_check_branch
      %11 = sbr.rel (0) target = $region5
    $region4: #{tpu_custom_call.1} parent=1 // pred_region
      %13 = vsyncadd [#allocation3], 0
      %s14 = sshll.u32 %s0, 4
      %s15 = int_to_ptr.hbm [resolvable:$true] %s14
      %s16 = sshll.u32 [#allocation2], 4
      %s17 = int_to_ptr.vmem [resolvable:$true] %s16
      %22 = dma.hbm_to_vmem [thread:$0]  %s15, 1024, %s17, [#allocation3], 256, 256, 16
    $region5: #{tpu_custom_call.1} parent=1 // pred_fallthru
      _
    // Predicated region
    $region6: #{tpu_custom_call.1} parent=1 // pred_check
      _
    $region7: #{tpu_custom_call.1} parent=1 // pred_check_branch
      %24 = sbr.rel (0) target = $region9
    $region8: #{tpu_custom_call.1} parent=1 // pred_region
      %26 = vsyncadd [#allocation6], 0
      %s27 = sshll.u32 %s1, 4
      %s28 = int_to_ptr.hbm [resolvable:$true] %s27
      %s29 = sshll.u32 [#allocation5], 4
      %s30 = int_to_ptr.vmem [resolvable:$true] %s29
      %35 = dma.hbm_to_vmem [thread:$0]  %s28, 256, %s30, [#allocation6], 128, 128, 8
    $region9: #{tpu_custom_call.1} parent=1 // pred_fallthru
      _
    // Predicated region
    $region10: #{tpu_custom_call.1} parent=1 // pred_check
      _
    $region11: #{tpu_custom_call.1} parent=1 // pred_check_branch
      %37 = sbr.rel (0) target = $region13
    $region12: #{tpu_custom_call.1} parent=1 // pred_region
      %39 = dma.done [#allocation3], 1024
    $region13: #{tpu_custom_call.1} parent=1 // pred_fallthru
      _
    // Predicated region
    $region14: #{tpu_custom_call.1} parent=1 // pred_check
      _
    $region15: #{tpu_custom_call.1} parent=1 // pred_check_branch
      %41 = sbr.rel (0) target = $region17
    $region16: #{tpu_custom_call.1} parent=1 // pred_region
      %43 = dma.done [#allocation6], 256
    $region17: #{tpu_custom_call.1} parent=1 // pred_fallthru
      _
    %v44 = vld [vmem:[#allocation2] sm:$0xff]
    %v45 = vld [vmem:[#allocation2 + $0x8] sm:$0xff]
    %v48 = vrot.slane %v45, 7
    %vm49 = vcmask 1040384
    %v50 = vsel %vm49, %v44, %v48
    %vm51 = vcmask 1041409
    %v52 = vsel %vm51, %v44, %v48
    %v53 = vrot.slane %v52, 1
    %v54 = vperm.slane %v50, 0
    %v55 = vperm.slane %v50, 1
    %v56 = vperm.slane %v53, 0
    %v57 = vperm.slane %v53, 1
    %v58 = vrot.slane %v55, 6
    %v59 = vrot.slane %v57, 6
    %vm60 = vcmask 1041408
    %v61 = vsel %vm60, %v54, %v58
    %v62 = vsel %vm60, %v56, %v59
    %65 = vst.sshfl [vmem:[#allocation1] sm:$0xff pattern:$0x73625140] %v44
    %66 = vst.sshfl [vmem:[#allocation1 + $0x8] sm:$0xff pattern:$0x73625140] %v45
    %s67 = scalar_lea.vmem [#allocation1], 1
    %v68 = vld [vmem:[%s67] ss:$4 sm:$0xff]
    %69 = vst.sshfl [vmem:[#allocation1 + $0x20] sm:$0xff pattern:$0x73625140] %v44
    %70 = vst.sshfl [vmem:[#allocation1 + $0x28] sm:$0xff pattern:$0x73625140] %v45
    %s71 = scalar_lea.vmem [#allocation1], 33
    %v72 = vld [vmem:[%s71] ss:$4 sm:$0xff]
    %v75 = vmul.f32 %v61, %v68
    %v76 = vmul.f32 %v62, %v72
    %77 = vst [vmem:[#allocation1] sm:$0xff] %v44
    %78 = vst [vmem:[#allocation1 + $0x9] sm:$0xff] %v45
    %s79 = scalar_lea.vmem [#allocation1], 4
    %v80 = vld [vmem:[%s79] ss:$9 sm:$0xff]
    %s81 = scalar_lea.vmem [#allocation1], 5
    %v82 = vld [vmem:[%s81] ss:$9 sm:$0xff]
    %v83 = vperm.slane %v80, 0
    %v84 = vperm.slane %v80, 1
    %v85 = vperm.slane %v82, 0
    %v86 = vperm.slane %v82, 1
    %v87 = vrot.slane %v84, 6
    %v88 = vrot.slane %v86, 6
    %v89 = vsel %vm60, %v83, %v87
    %v90 = vsel %vm60, %v85, %v88
    %93 = vst.sshfl [vmem:[#allocation1] sm:$0xff pattern:$0x73625140] %v44
    %94 = vst.sshfl [vmem:[#allocation1 + $0x8] sm:$0xff pattern:$0x73625140] %v45
    %s95 = scalar_lea.vmem [#allocation1], 3
    %v96 = vld [vmem:[%s95] ss:$4 sm:$0xff]
    %97 = vst.sshfl [vmem:[#allocation1 + $0x20] sm:$0xff pattern:$0x73625140] %v44
    %98 = vst.sshfl [vmem:[#allocation1 + $0x28] sm:$0xff pattern:$0x73625140] %v45
    %s99 = scalar_lea.vmem [#allocation1], 35
    %v100 = vld [vmem:[%s99] ss:$4 sm:$0xff]
    %v103 = vmul.f32 %v89, %v96
    %v104 = vmul.f32 %v90, %v100
    %v107 = vrot.slane %v75, 1
    %v108 = vrot.slane %v75, 2
    %v109 = vrot.slane %v75, 3
    %v110 = vrot.slane %v76, 1
    %v111 = vrot.slane %v76, 2
    %v112 = vrot.slane %v76, 3
    %v113 = vsel %vm49, %v75, %v107
    %vm114 = vcmask 1042434
    %v115 = vsel %vm114, %v108, %v109
    %v116 = vsel %vm60, %v113, %v115
    %v117 = vsel %vm51, %v75, %v107
    %vm118 = vcmask 1043459
    %v119 = vsel %vm118, %v108, %v109
    %vm120 = vcmask 1042433
    %v121 = vsel %vm120, %v117, %v119
    %v122 = vrot.slane %v121, 1
    %v123 = vsel %vm49, %v76, %v110
    %v124 = vsel %vm114, %v111, %v112
    %v125 = vsel %vm60, %v123, %v124
    %v126 = vsel %vm51, %v76, %v110
    %v127 = vsel %vm118, %v111, %v112
    %v128 = vsel %vm120, %v126, %v127
    %v129 = vrot.slane %v128, 1
    %v130 = vperm.slane %v116, 0
    %v131 = vperm.slane %v116, 1
    %v132 = vperm.slane %v122, 0
    %v133 = vperm.slane %v122, 1
    %v134 = vperm.slane %v125, 0
    %v135 = vperm.slane %v125, 1
    %v136 = vperm.slane %v129, 0
    %v137 = vperm.slane %v129, 1
    %v138 = vrot.slane %v131, 4
    %v139 = vrot.slane %v133, 4
    %v140 = vrot.slane %v135, 4
    %v141 = vrot.slane %v137, 4
    %vm142 = vcmask 1043456
    %v143 = vsel %vm142, %v130, %v138
    %v144 = vsel %vm142, %v132, %v139
    %v145 = vsel %vm142, %v134, %v140
    %v146 = vsel %vm142, %v136, %v141
    %153 = vst [vmem:[#allocation1] ss:$2 sm:$0xff] %v103
    %s154 = scalar_lea.vmem [#allocation1], 1
    %155 = vst [vmem:[%s154] ss:$2 sm:$0xff] %v104
    %s156 = scalar_lea.vmem [#allocation1], 16
    %157 = vst [vmem:[%s156] ss:$2 sm:$0xff] %v103
    %s158 = scalar_lea.vmem [#allocation1], 17
    %159 = vst [vmem:[%s158] ss:$2 sm:$0xff] %v104
    %s160 = scalar_lea.vmem [#allocation1], 32
    %161 = vst [vmem:[%s160] ss:$2 sm:$0xff] %v103
    %s162 = scalar_lea.vmem [#allocation1], 33
    %163 = vst [vmem:[%s162] ss:$2 sm:$0xff] %v104
    %s164 = scalar_lea.vmem [#allocation1], 48
    %165 = vst [vmem:[%s164] ss:$2 sm:$0xff] %v103
    %s166 = scalar_lea.vmem [#allocation1], 49
    %167 = vst [vmem:[%s166] ss:$2 sm:$0xff] %v104
    %v168 = vld.sshfl [vmem:[#allocation1] sm:$0xff pattern:$0x75643120]
    %v169 = vld.sshfl [vmem:[#allocation1 + $0x10] sm:$0xff pattern:$0x75643120]
    %v170 = vld.sshfl [vmem:[#allocation1 + $0x20] sm:$0xff pattern:$0x75643120]
    %v171 = vld.sshfl [vmem:[#allocation1 + $0x30] sm:$0xff pattern:$0x75643120]
    %v176 = vmul.f32 %v143, %v168
    %v177 = vmul.f32 %v144, %v169
    %v178 = vmul.f32 %v145, %v170
    %v179 = vmul.f32 %v146, %v171
    %s180 = scalar_lea.vmem [#allocation2], 16
    %v181 = vld [vmem:[%s180] sm:$0xff]
    %v182 = vld [vmem:[%s180 + $0x8] sm:$0xff]
    %v185 = vrot.slane %v182, 7
    %v186 = vsel %vm49, %v181, %v185
    %v187 = vsel %vm51, %v181, %v185
    %v188 = vrot.slane %v187, 1
    %v189 = vperm.slane %v186, 0
    %v190 = vperm.slane %v186, 1
    %v191 = vperm.slane %v188, 0
    %v192 = vperm.slane %v188, 1
    %v193 = vrot.slane %v190, 6
    %v194 = vrot.slane %v192, 6
    %v195 = vsel %vm60, %v189, %v193
    %v196 = vsel %vm60, %v191, %v194
    %199 = vst.sshfl [vmem:[#allocation1] sm:$0xff pattern:$0x73625140] %v181
    %200 = vst.sshfl [vmem:[#allocation1 + $0x8] sm:$0xff pattern:$0x73625140] %v182
    %s201 = scalar_lea.vmem [#allocation1], 1
    %v202 = vld [vmem:[%s201] ss:$4 sm:$0xff]
    %203 = vst.sshfl [vmem:[#allocation1 + $0x20] sm:$0xff pattern:$0x73625140] %v181
    %204 = vst.sshfl [vmem:[#allocation1 + $0x28] sm:$0xff pattern:$0x73625140] %v182
    %s205 = scalar_lea.vmem [#allocation1], 33
    %v206 = vld [vmem:[%s205] ss:$4 sm:$0xff]
    %v209 = vmul.f32 %v195, %v202
    %v210 = vmul.f32 %v196, %v206
    %211 = vst [vmem:[#allocation1] sm:$0xff] %v181
    %212 = vst [vmem:[#allocation1 + $0x9] sm:$0xff] %v182
    %s213 = scalar_lea.vmem [#allocation1], 4
    %v214 = vld [vmem:[%s213] ss:$9 sm:$0xff]
    %s215 = scalar_lea.vmem [#allocation1], 5
    %v216 = vld [vmem:[%s215] ss:$9 sm:$0xff]
    %v217 = vperm.slane %v214, 0
    %v218 = vperm.slane %v214, 1
    %v219 = vperm.slane %v216, 0
    %v220 = vperm.slane %v216, 1
    %v221 = vrot.slane %v218, 6
    %v222 = vrot.slane %v220, 6
    %v223 = vsel %vm60, %v217, %v221
    %v224 = vsel %vm60, %v219, %v222
    %227 = vst.sshfl [vmem:[#allocation1] sm:$0xff pattern:$0x73625140] %v181
    %228 = vst.sshfl [vmem:[#allocation1 + $0x8] sm:$0xff pattern:$0x73625140] %v182
    %s229 = scalar_lea.vmem [#allocation1], 3
    %v230 = vld [vmem:[%s229] ss:$4 sm:$0xff]
    %231 = vst.sshfl [vmem:[#allocation1 + $0x20] sm:$0xff pattern:$0x73625140] %v181
    %232 = vst.sshfl [vmem:[#allocation1 + $0x28] sm:$0xff pattern:$0x73625140] %v182
    %s233 = scalar_lea.vmem [#allocation1], 35
    %v234 = vld [vmem:[%s233] ss:$4 sm:$0xff]
    %v237 = vmul.f32 %v223, %v230
    %v238 = vmul.f32 %v224, %v234
    %v241 = vrot.slane %v209, 1
    %v242 = vrot.slane %v209, 2
    %v243 = vrot.slane %v209, 3
    %v244 = vrot.slane %v210, 1
    %v245 = vrot.slane %v210, 2
    %v246 = vrot.slane %v210, 3
    %v247 = vsel %vm49, %v209, %v241
    %v248 = vsel %vm114, %v242, %v243
    %v249 = vsel %vm60, %v247, %v248
    %v250 = vsel %vm51, %v209, %v241
    %v251 = vsel %vm118, %v242, %v243
    %v252 = vsel %vm120, %v250, %v251
    %v253 = vrot.slane %v252, 1
    %v254 = vsel %vm49, %v210, %v244
    %v255 = vsel %vm114, %v245, %v246
    %v256 = vsel %vm60, %v254, %v255
    %v257 = vsel %vm51, %v210, %v244
    %v258 = vsel %vm118, %v245, %v246
    %v259 = vsel %vm120, %v257, %v258
    %v260 = vrot.slane %v259, 1
    %v261 = vperm.slane %v249, 0
    %v262 = vperm.slane %v249, 1
    %v263 = vperm.slane %v253, 0
    %v264 = vperm.slane %v253, 1
    %v265 = vperm.slane %v256, 0
    %v266 = vperm.slane %v256, 1
    %v267 = vperm.slane %v260, 0
    %v268 = vperm.slane %v260, 1
    %v269 = vrot.slane %v262, 4
    %v270 = vrot.slane %v264, 4
    %v271 = vrot.slane %v266, 4
    %v272 = vrot.slane %v268, 4
    %v273 = vsel %vm142, %v261, %v269
    %v274 = vsel %vm142, %v263, %v270
    %v275 = vsel %vm142, %v265, %v271
    %v276 = vsel %vm142, %v267, %v272
    %283 = vst [vmem:[#allocation1] ss:$2 sm:$0xff] %v237
    %s284 = scalar_lea.vmem [#allocation1], 1
    %285 = vst [vmem:[%s284] ss:$2 sm:$0xff] %v238
    %s286 = scalar_lea.vmem [#allocation1], 16
    %287 = vst [vmem:[%s286] ss:$2 sm:$0xff] %v237
    %s288 = scalar_lea.vmem [#allocation1], 17
    %289 = vst [vmem:[%s288] ss:$2 sm:$0xff] %v238
    %s290 = scalar_lea.vmem [#allocation1], 32
    %291 = vst [vmem:[%s290] ss:$2 sm:$0xff] %v237
    %s292 = scalar_lea.vmem [#allocation1], 33
    %293 = vst [vmem:[%s292] ss:$2 sm:$0xff] %v238
    %s294 = scalar_lea.vmem [#allocation1], 48
    %295 = vst [vmem:[%s294] ss:$2 sm:$0xff] %v237
    %s296 = scalar_lea.vmem [#allocation1], 49
    %297 = vst [vmem:[%s296] ss:$2 sm:$0xff] %v238
    %v298 = vld.sshfl [vmem:[#allocation1] sm:$0xff pattern:$0x75643120]
    %v299 = vld.sshfl [vmem:[#allocation1 + $0x10] sm:$0xff pattern:$0x75643120]
    %v300 = vld.sshfl [vmem:[#allocation1 + $0x20] sm:$0xff pattern:$0x75643120]
    %v301 = vld.sshfl [vmem:[#allocation1 + $0x30] sm:$0xff pattern:$0x75643120]
    %v306 = vmul.f32 %v273, %v298
    %v307 = vmul.f32 %v274, %v299
    %v308 = vmul.f32 %v275, %v300
    %v309 = vmul.f32 %v276, %v301
    %s310 = scalar_lea.vmem [#allocation2], 32
    %v311 = vld [vmem:[%s310] sm:$0xff]
    %v312 = vld [vmem:[%s310 + $0x8] sm:$0xff]
    %v315 = vrot.slane %v312, 7
    %v316 = vsel %vm49, %v311, %v315
    %v317 = vsel %vm51, %v311, %v315
    %v318 = vrot.slane %v317, 1
    %v319 = vperm.slane %v316, 0
    %v320 = vperm.slane %v316, 1
    %v321 = vperm.slane %v318, 0
    %v322 = vperm.slane %v318, 1
    %v323 = vrot.slane %v320, 6
    %v324 = vrot.slane %v322, 6
    %v325 = vsel %vm60, %v319, %v323
    %v326 = vsel %vm60, %v321, %v324
    %329 = vst.sshfl [vmem:[#allocation1] sm:$0xff pattern:$0x73625140] %v311
    %330 = vst.sshfl [vmem:[#allocation1 + $0x8] sm:$0xff pattern:$0x73625140] %v312
    %s331 = scalar_lea.vmem [#allocation1], 1
    %v332 = vld [vmem:[%s331] ss:$4 sm:$0xff]
    %333 = vst.sshfl [vmem:[#allocation1 + $0x20] sm:$0xff pattern:$0x73625140] %v311
    %334 = vst.sshfl [vmem:[#allocation1 + $0x28] sm:$0xff pattern:$0x73625140] %v312
    %s335 = scalar_lea.vmem [#allocation1], 33
    %v336 = vld [vmem:[%s335] ss:$4 sm:$0xff]
    %v339 = vmul.f32 %v325, %v332
    %v340 = vmul.f32 %v326, %v336
    %341 = vst [vmem:[#allocation1] sm:$0xff] %v311
    %342 = vst [vmem:[#allocation1 + $0x9] sm:$0xff] %v312
    %s343 = scalar_lea.vmem [#allocation1], 4
    %v344 = vld [vmem:[%s343] ss:$9 sm:$0xff]
    %s345 = scalar_lea.vmem [#allocation1], 5
    %v346 = vld [vmem:[%s345] ss:$9 sm:$0xff]
    %v347 = vperm.slane %v344, 0
    %v348 = vperm.slane %v344, 1
    %v349 = vperm.slane %v346, 0
    %v350 = vperm.slane %v346, 1
    %v351 = vrot.slane %v348, 6
    %v352 = vrot.slane %v350, 6
    %v353 = vsel %vm60, %v347, %v351
    %v354 = vsel %vm60, %v349, %v352
    %357 = vst.sshfl [vmem:[#allocation1] sm:$0xff pattern:$0x73625140] %v311
    %358 = vst.sshfl [vmem:[#allocation1 + $0x8] sm:$0xff pattern:$0x73625140] %v312
    %s359 = scalar_lea.vmem [#allocation1], 3
    %v360 = vld [vmem:[%s359] ss:$4 sm:$0xff]
    %361 = vst.sshfl [vmem:[#allocation1 + $0x20] sm:$0xff pattern:$0x73625140] %v311
    %362 = vst.sshfl [vmem:[#allocation1 + $0x28] sm:$0xff pattern:$0x73625140] %v312
    %s363 = scalar_lea.vmem [#allocation1], 35
    %v364 = vld [vmem:[%s363] ss:$4 sm:$0xff]
    %v367 = vmul.f32 %v353, %v360
    %v368 = vmul.f32 %v354, %v364
    %v371 = vrot.slane %v339, 1
    %v372 = vrot.slane %v339, 2
    %v373 = vrot.slane %v339, 3
    %v374 = vrot.slane %v340, 1
    %v375 = vrot.slane %v340, 2
    %v376 = vrot.slane %v340, 3
    %v377 = vsel %vm49, %v339, %v371
    %v378 = vsel %vm114, %v372, %v373
    %v379 = vsel %vm60, %v377, %v378
    %v380 = vsel %vm51, %v339, %v371
    %v381 = vsel %vm118, %v372, %v373
    %v382 = vsel %vm120, %v380, %v381
    %v383 = vrot.slane %v382, 1
    %v384 = vsel %vm49, %v340, %v374
    %v385 = vsel %vm114, %v375, %v376
    %v386 = vsel %vm60, %v384, %v385
    %v387 = vsel %vm51, %v340, %v374
    %v388 = vsel %vm118, %v375, %v376
    %v389 = vsel %vm120, %v387, %v388
    %v390 = vrot.slane %v389, 1
    %v391 = vperm.slane %v379, 0
    %v392 = vperm.slane %v379, 1
    %v393 = vperm.slane %v383, 0
    %v394 = vperm.slane %v383, 1
    %v395 = vperm.slane %v386, 0
    %v396 = vperm.slane %v386, 1
    %v397 = vperm.slane %v390, 0
    %v398 = vperm.slane %v390, 1
    %v399 = vrot.slane %v392, 4
    %v400 = vrot.slane %v394, 4
    %v401 = vrot.slane %v396, 4
    %v402 = vrot.slane %v398, 4
    %v403 = vsel %vm142, %v391, %v399
    %v404 = vsel %vm142, %v393, %v400
    %v405 = vsel %vm142, %v395, %v401
    %v406 = vsel %vm142, %v397, %v402
    %413 = vst [vmem:[#allocation1] ss:$2 sm:$0xff] %v367
    %s414 = scalar_lea.vmem [#allocation1], 1
    %415 = vst [vmem:[%s414] ss:$2 sm:$0xff] %v368
    %s416 = scalar_lea.vmem [#allocation1], 16
    %417 = vst [vmem:[%s416] ss:$2 sm:$0xff] %v367
    %s418 = scalar_lea.vmem [#allocation1], 17
    %419 = vst [vmem:[%s418] ss:$2 sm:$0xff] %v368
    %s420 = scalar_lea.vmem [#allocation1], 32
    %421 = vst [vmem:[%s420] ss:$2 sm:$0xff] %v367
    %s422 = scalar_lea.vmem [#allocation1], 33
    %423 = vst [vmem:[%s422] ss:$2 sm:$0xff] %v368
    %s424 = scalar_lea.vmem [#allocation1], 48
    %425 = vst [vmem:[%s424] ss:$2 sm:$0xff] %v367
    %s426 = scalar_lea.vmem [#allocation1], 49
    %427 = vst [vmem:[%s426] ss:$2 sm:$0xff] %v368
    %v428 = vld.sshfl [vmem:[#allocation1] sm:$0xff pattern:$0x75643120]
    %v429 = vld.sshfl [vmem:[#allocation1 + $0x10] sm:$0xff pattern:$0x75643120]
    %v430 = vld.sshfl [vmem:[#allocation1 + $0x20] sm:$0xff pattern:$0x75643120]
    %v431 = vld.sshfl [vmem:[#allocation1 + $0x30] sm:$0xff pattern:$0x75643120]
    %v436 = vmul.f32 %v403, %v428
    %v437 = vmul.f32 %v404, %v429
    %v438 = vmul.f32 %v405, %v430
    %v439 = vmul.f32 %v406, %v431
    %s440 = scalar_lea.vmem [#allocation2], 48
    %v441 = vld [vmem:[%s440] sm:$0xff]
    %v442 = vld [vmem:[%s440 + $0x8] sm:$0xff]
    %v445 = vrot.slane %v442, 7
    %v446 = vsel %vm49, %v441, %v445
    %v447 = vsel %vm51, %v441, %v445
    %v448 = vrot.slane %v447, 1
    %v449 = vperm.slane %v446, 0
    %v450 = vperm.slane %v446, 1
    %v451 = vperm.slane %v448, 0
    %v452 = vperm.slane %v448, 1
    %v453 = vrot.slane %v450, 6
    %v454 = vrot.slane %v452, 6
    %v455 = vsel %vm60, %v449, %v453
    %v456 = vsel %vm60, %v451, %v454
    %459 = vst.sshfl [vmem:[#allocation1] sm:$0xff pattern:$0x73625140] %v441
    %460 = vst.sshfl [vmem:[#allocation1 + $0x8] sm:$0xff pattern:$0x73625140] %v442
    %s461 = scalar_lea.vmem [#allocation1], 1
    %v462 = vld [vmem:[%s461] ss:$4 sm:$0xff]
    %463 = vst.sshfl [vmem:[#allocation1 + $0x20] sm:$0xff pattern:$0x73625140] %v441
    %464 = vst.sshfl [vmem:[#allocation1 + $0x28] sm:$0xff pattern:$0x73625140] %v442
    %s465 = scalar_lea.vmem [#allocation1], 33
    %v466 = vld [vmem:[%s465] ss:$4 sm:$0xff]
    %v469 = vmul.f32 %v455, %v462
    %v470 = vmul.f32 %v456, %v466
    %471 = vst [vmem:[#allocation1] sm:$0xff] %v441
    %472 = vst [vmem:[#allocation1 + $0x9] sm:$0xff] %v442
    %s473 = scalar_lea.vmem [#allocation1], 4
    %v474 = vld [vmem:[%s473] ss:$9 sm:$0xff]
    %s475 = scalar_lea.vmem [#allocation1], 5
    %v476 = vld [vmem:[%s475] ss:$9 sm:$0xff]
    %v477 = vperm.slane %v474, 0
    %v478 = vperm.slane %v474, 1
    %v479 = vperm.slane %v476, 0
    %v480 = vperm.slane %v476, 1
    %v481 = vrot.slane %v478, 6
    %v482 = vrot.slane %v480, 6
    %v483 = vsel %vm60, %v477, %v481
    %v484 = vsel %vm60, %v479, %v482
    %487 = vst.sshfl [vmem:[#allocation1] sm:$0xff pattern:$0x73625140] %v441
    %488 = vst.sshfl [vmem:[#allocation1 + $0x8] sm:$0xff pattern:$0x73625140] %v442
    %s489 = scalar_lea.vmem [#allocation1], 3
    %v490 = vld [vmem:[%s489] ss:$4 sm:$0xff]
    %491 = vst.sshfl [vmem:[#allocation1 + $0x20] sm:$0xff pattern:$0x73625140] %v441
    %492 = vst.sshfl [vmem:[#allocation1 + $0x28] sm:$0xff pattern:$0x73625140] %v442
    %s493 = scalar_lea.vmem [#allocation1], 35
    %v494 = vld [vmem:[%s493] ss:$4 sm:$0xff]
    %v497 = vmul.f32 %v483, %v490
    %v498 = vmul.f32 %v484, %v494
    %v501 = vrot.slane %v469, 1
    %v502 = vrot.slane %v469, 2
    %v503 = vrot.slane %v469, 3
    %v504 = vrot.slane %v470, 1
    %v505 = vrot.slane %v470, 2
    %v506 = vrot.slane %v470, 3
    %v507 = vsel %vm49, %v469, %v501
    %v508 = vsel %vm114, %v502, %v503
    %v509 = vsel %vm60, %v507, %v508
    %v510 = vsel %vm51, %v469, %v501
    %v511 = vsel %vm118, %v502, %v503
    %v512 = vsel %vm120, %v510, %v511
    %v513 = vrot.slane %v512, 1
    %v514 = vsel %vm49, %v470, %v504
    %v515 = vsel %vm114, %v505, %v506
    %v516 = vsel %vm60, %v514, %v515
    %v517 = vsel %vm51, %v470, %v504
    %v518 = vsel %vm118, %v505, %v506
    %v519 = vsel %vm120, %v517, %v518
    %v520 = vrot.slane %v519, 1
    %v521 = vperm.slane %v509, 0
    %v522 = vperm.slane %v509, 1
    %v523 = vperm.slane %v513, 0
    %v524 = vperm.slane %v513, 1
    %v525 = vperm.slane %v516, 0
    %v526 = vperm.slane %v516, 1
    %v527 = vperm.slane %v520, 0
    %v528 = vperm.slane %v520, 1
    %v529 = vrot.slane %v522, 4
    %v530 = vrot.slane %v524, 4
    %v531 = vrot.slane %v526, 4
    %v532 = vrot.slane %v528, 4
    %v533 = vsel %vm142, %v521, %v529
    %v534 = vsel %vm142, %v523, %v530
    %v535 = vsel %vm142, %v525, %v531
    %v536 = vsel %vm142, %v527, %v532
    %543 = vst [vmem:[#allocation1] ss:$2 sm:$0xff] %v497
    %s544 = scalar_lea.vmem [#allocation1], 1
    %545 = vst [vmem:[%s544] ss:$2 sm:$0xff] %v498
    %s546 = scalar_lea.vmem [#allocation1], 16
    %547 = vst [vmem:[%s546] ss:$2 sm:$0xff] %v497
    %s548 = scalar_lea.vmem [#allocation1], 17
    %549 = vst [vmem:[%s548] ss:$2 sm:$0xff] %v498
    %s550 = scalar_lea.vmem [#allocation1], 32
    %551 = vst [vmem:[%s550] ss:$2 sm:$0xff] %v497
    %s552 = scalar_lea.vmem [#allocation1], 33
    %553 = vst [vmem:[%s552] ss:$2 sm:$0xff] %v498
    %s554 = scalar_lea.vmem [#allocation1], 48
    %555 = vst [vmem:[%s554] ss:$2 sm:$0xff] %v497
    %s556 = scalar_lea.vmem [#allocation1], 49
    %557 = vst [vmem:[%s556] ss:$2 sm:$0xff] %v498
    %v558 = vld.sshfl [vmem:[#allocation1] sm:$0xff pattern:$0x75643120]
    %v559 = vld.sshfl [vmem:[#allocation1 + $0x10] sm:$0xff pattern:$0x75643120]
    %v560 = vld.sshfl [vmem:[#allocation1 + $0x20] sm:$0xff pattern:$0x75643120]
    %v561 = vld.sshfl [vmem:[#allocation1 + $0x30] sm:$0xff pattern:$0x75643120]
    %v566 = vmul.f32 %v533, %v558
    %v567 = vmul.f32 %v534, %v559
    %v568 = vmul.f32 %v535, %v560
    %v569 = vmul.f32 %v536, %v561
    %574 = vst [vmem:[#allocation1] ss:$2 sm:$0xff] %v176
    %s575 = scalar_lea.vmem [#allocation1], 1
    %576 = vst [vmem:[%s575] ss:$2 sm:$0xff] %v177
    %s577 = scalar_lea.vmem [#allocation1], 16
    %578 = vst [vmem:[%s577] ss:$2 sm:$0xff] %v178
    %s579 = scalar_lea.vmem [#allocation1], 17
    %580 = vst [vmem:[%s579] ss:$2 sm:$0xff] %v179
    %v581 = vld.sshfl [vmem:[#allocation1] sm:$0xff pattern:$0x75316420]
    %v582 = vld.sshfl [vmem:[#allocation1 + $0x8] sm:$0xff pattern:$0x75316420]
    %v583 = vld.sshfl [vmem:[#allocation1 + $0x10] sm:$0xff pattern:$0x75316420]
    %v584 = vld.sshfl [vmem:[#allocation1 + $0x18] sm:$0xff pattern:$0x75316420]
    %593 = vst [vmem:[#allocation1] ss:$2 sm:$0xff] %v306
    %s594 = scalar_lea.vmem [#allocation1], 1
    %595 = vst [vmem:[%s594] ss:$2 sm:$0xff] %v307
    %s596 = scalar_lea.vmem [#allocation1], 16
    %597 = vst [vmem:[%s596] ss:$2 sm:$0xff] %v308
    %s598 = scalar_lea.vmem [#allocation1], 17
    %599 = vst [vmem:[%s598] ss:$2 sm:$0xff] %v309
    %v600 = vld.sshfl [vmem:[#allocation1] sm:$0xff pattern:$0x75316420]
    %v601 = vld.sshfl [vmem:[#allocation1 + $0x8] sm:$0xff pattern:$0x75316420]
    %v602 = vld.sshfl [vmem:[#allocation1 + $0x10] sm:$0xff pattern:$0x75316420]
    %v603 = vld.sshfl [vmem:[#allocation1 + $0x18] sm:$0xff pattern:$0x75316420]
    %612 = vst [vmem:[#allocation1] ss:$2 sm:$0xff] %v436
    %s613 = scalar_lea.vmem [#allocation1], 1
    %614 = vst [vmem:[%s613] ss:$2 sm:$0xff] %v437
    %s615 = scalar_lea.vmem [#allocation1], 16
    %616 = vst [vmem:[%s615] ss:$2 sm:$0xff] %v438
    %s617 = scalar_lea.vmem [#allocation1], 17
    %618 = vst [vmem:[%s617] ss:$2 sm:$0xff] %v439
    %v619 = vld.sshfl [vmem:[#allocation1] sm:$0xff pattern:$0x75316420]
    %v620 = vld.sshfl [vmem:[#allocation1 + $0x8] sm:$0xff pattern:$0x75316420]
    %v621 = vld.sshfl [vmem:[#allocation1 + $0x10] sm:$0xff pattern:$0x75316420]
    %v622 = vld.sshfl [vmem:[#allocation1 + $0x18] sm:$0xff pattern:$0x75316420]
    %631 = vst [vmem:[#allocation1] ss:$2 sm:$0xff] %v566
    %s632 = scalar_lea.vmem [#allocation1], 1
    %633 = vst [vmem:[%s632] ss:$2 sm:$0xff] %v567
    %s634 = scalar_lea.vmem [#allocation1], 16
    %635 = vst [vmem:[%s634] ss:$2 sm:$0xff] %v568
    %s636 = scalar_lea.vmem [#allocation1], 17
    %637 = vst [vmem:[%s636] ss:$2 sm:$0xff] %v569
    %v638 = vld.sshfl [vmem:[#allocation1] sm:$0xff pattern:$0x75316420]
    %v639 = vld.sshfl [vmem:[#allocation1 + $0x8] sm:$0xff pattern:$0x75316420]
    %v640 = vld.sshfl [vmem:[#allocation1 + $0x10] sm:$0xff pattern:$0x75316420]
    %v641 = vld.sshfl [vmem:[#allocation1 + $0x18] sm:$0xff pattern:$0x75316420]
    %v646 = vld [vmem:[#allocation5] sm:$0xff]
    %v647 = vld [vmem:[#allocation5 + $0x8] sm:$0xff]
    %vm648 = vcmask 523264
    %v650 = vsel %vm648, %v646, 0
    %v653 = vsel %vm648, %v647, 0
    %655 = vmatpush.msra.mxu0 0.0
    %656 = vmatpush.msra.mxu0 0.0
    %657 = vmatpush.msra.mxu0 0.0
    %658 = vmatpush.msra.mxu0 0.0
    %659 = vmatpush.msra.mxu0 0.0
    %660 = vmatpush.msra.mxu0 0.0
    %661 = vmatpush.msra.mxu0 0.0
    %662 = vmatpush.msra.mxu0 0.0
    %663 = vmatpush.msra.mxu0 %v640
    %664 = vmatpush.msra.mxu0 %v638
    %665 = vmatpush.msra.mxu0 %v621
    %666 = vmatpush.msra.mxu0 %v619
    %667 = vmatpush.msra.mxu0 %v602
    %668 = vmatpush.msra.mxu0 %v600
    %669 = vmatpush.msra.mxu0 %v583
    %670 = vmatpush.msra.mxu0 %v581
    %671 = vmatmul.f32.gmra.mxu0 %v650
    %v672 = vpop.f32.mrf.mxu0
    %v673 = vadd.f32 0.0, %v672
    %674 = vmatmul.f32.gmra.mxu0 %v653
    %v675 = vpop.f32.mrf.mxu0
    %v676 = vadd.f32 0.0, %v675
    %677 = vdwg.mxu0
    %678 = vmatpush.msra.mxu0 0.0
    %679 = vmatpush.msra.mxu0 0.0
    %680 = vmatpush.msra.mxu0 0.0
    %681 = vmatpush.msra.mxu0 0.0
    %682 = vmatpush.msra.mxu0 0.0
    %683 = vmatpush.msra.mxu0 0.0
    %684 = vmatpush.msra.mxu0 0.0
    %685 = vmatpush.msra.mxu0 0.0
    %686 = vmatpush.msra.mxu0 %v641
    %687 = vmatpush.msra.mxu0 %v639
    %688 = vmatpush.msra.mxu0 %v622
    %689 = vmatpush.msra.mxu0 %v620
    %690 = vmatpush.msra.mxu0 %v603
    %691 = vmatpush.msra.mxu0 %v601
    %692 = vmatpush.msra.mxu0 %v584
    %693 = vmatpush.msra.mxu0 %v582
    %694 = vmatmul.f32.gmra.mxu0 %v650
    %v695 = vpop.f32.mrf.mxu0
    %v696 = vadd.f32 0.0, %v695
    %697 = vmatmul.f32.gmra.mxu0 %v653
    %v698 = vpop.f32.mrf.mxu0
    %v699 = vadd.f32 0.0, %v698
    %700 = vdwg.mxu0
    %v705 = vrot.slane %v696, 4
    %v706 = vrot.slane %v699, 4
    %v707 = vsel %vm142, %v673, %v705
    %v708 = vsel %vm142, %v705, %v673
    %v709 = vrot.slane %v708, 4
    %v710 = vsel %vm142, %v676, %v706
    %v711 = vsel %vm142, %v706, %v676
    %v712 = vrot.slane %v711, 4
    %v717 = vmul.f32 %v707, %v707
    %v718 = vmul.f32 %v709, %v709
    %v719 = vmul.f32 %v710, %v710
    %v720 = vmul.f32 %v712, %v712
    %725 = vst [vmem:[#allocation1] ss:$2 sm:$0xff] %v717
    %v726 = vld.sshfl [vmem:[#allocation1] sm:$0xff pattern:$0x75316420]
    %v727 = vld.sshfl [vmem:[#allocation1 + $0x8] sm:$0xff pattern:$0x75316420]
    %s728 = scalar_lea.vmem [#allocation1], 16
    %729 = vst [vmem:[%s728] ss:$2 sm:$0xff] %v718
    %v730 = vld.sshfl [vmem:[#allocation1 + $0x10] sm:$0xff pattern:$0x75316420]
    %v731 = vld.sshfl [vmem:[#allocation1 + $0x18] sm:$0xff pattern:$0x75316420]
    %s732 = scalar_lea.vmem [#allocation1], 32
    %733 = vst [vmem:[%s732] ss:$2 sm:$0xff] %v719
    %v734 = vld.sshfl [vmem:[#allocation1 + $0x20] sm:$0xff pattern:$0x75316420]
    %v735 = vld.sshfl [vmem:[#allocation1 + $0x28] sm:$0xff pattern:$0x75316420]
    %s736 = scalar_lea.vmem [#allocation1], 48
    %737 = vst [vmem:[%s736] ss:$2 sm:$0xff] %v720
    %v738 = vld.sshfl [vmem:[#allocation1 + $0x30] sm:$0xff pattern:$0x75316420]
    %v739 = vld.sshfl [vmem:[#allocation1 + $0x38] sm:$0xff pattern:$0x75316420]
    %v748 = vsel %vm142, %v726, 0.0
    %v749 = vrot.slane %v748, 4
    %v750 = vadd.f32 %v748, %v749
    %v751 = vrot.slane %v750, 2
    %v752 = vadd.f32 %v750, %v751
    %v753 = vrot.slane %v752, 1
    %v754 = vadd.f32 %v752, %v753
    %v755 = vsel %vm142, %v727, 0.0
    %v756 = vrot.slane %v755, 4
    %v757 = vadd.f32 %v755, %v756
    %v758 = vrot.slane %v757, 2
    %v759 = vadd.f32 %v757, %v758
    %v760 = vrot.slane %v759, 1
    %v761 = vadd.f32 %v759, %v760
    %v762 = vsel %vm142, %v730, 0.0
    %v763 = vrot.slane %v762, 4
    %v764 = vadd.f32 %v762, %v763
    %v765 = vrot.slane %v764, 2
    %v766 = vadd.f32 %v764, %v765
    %v767 = vrot.slane %v766, 1
    %v768 = vadd.f32 %v766, %v767
    %v769 = vsel %vm142, %v731, 0.0
    %v770 = vrot.slane %v769, 4
    %v771 = vadd.f32 %v769, %v770
    %v772 = vrot.slane %v771, 2
    %v773 = vadd.f32 %v771, %v772
    %v774 = vrot.slane %v773, 1
    %v775 = vadd.f32 %v773, %v774
    %v776 = vsel %vm142, %v734, 0.0
    %v777 = vrot.slane %v776, 4
    %v778 = vadd.f32 %v776, %v777
    %v779 = vrot.slane %v778, 2
    %v780 = vadd.f32 %v778, %v779
    %v781 = vrot.slane %v780, 1
    %v782 = vadd.f32 %v780, %v781
    %v783 = vsel %vm142, %v735, 0.0
    %v784 = vrot.slane %v783, 4
    %v785 = vadd.f32 %v783, %v784
    %v786 = vrot.slane %v785, 2
    %v787 = vadd.f32 %v785, %v786
    %v788 = vrot.slane %v787, 1
    %v789 = vadd.f32 %v787, %v788
    %v790 = vsel %vm142, %v738, 0.0
    %v791 = vrot.slane %v790, 4
    %v792 = vadd.f32 %v790, %v791
    %v793 = vrot.slane %v792, 2
    %v794 = vadd.f32 %v792, %v793
    %v795 = vrot.slane %v794, 1
    %v796 = vadd.f32 %v794, %v795
    %v797 = vsel %vm142, %v739, 0.0
    %v798 = vrot.slane %v797, 4
    %v799 = vadd.f32 %v797, %v798
    %v800 = vrot.slane %v799, 2
    %v801 = vadd.f32 %v799, %v800
    %v802 = vrot.slane %v801, 1
    %v803 = vadd.f32 %v801, %v802
    %v804 = vmax.f32 %v754, 1e-24
    %v805 = vmax.f32 %v761, 1e-24
    %v806 = vmax.f32 %v768, 1e-24
    %v807 = vmax.f32 %v775, 1e-24
    %v808 = vmax.f32 %v782, 1e-24
    %v809 = vmax.f32 %v789, 1e-24
    %v810 = vmax.f32 %v796, 1e-24
    %v811 = vmax.f32 %v803, 1e-24
    %v812 = vrsqrt.pop %v804
    %v813 = vmul.f32 %v812, %v804
    %v814 = vmul.f32 %v813, %v812
    %v815 = vmul.f32 0.5, %v814
    %v816 = vsub.f32 1.5, %v815
    %v817 = vmul.f32 %v812, %v816
    %vm818 = vweird.f32 %v804
    %vm819 = vweird.f32 %v812
    %vm820 = vmor %vm818, %vm819
    %v821 = vsel %vm820, %v812, %v817
    %v822 = vrsqrt.pop %v805
    %v823 = vmul.f32 %v822, %v805
    %v824 = vmul.f32 %v823, %v822
    %v825 = vmul.f32 0.5, %v824
    %v826 = vsub.f32 1.5, %v825
    %v827 = vmul.f32 %v822, %v826
    %vm828 = vweird.f32 %v805
    %vm829 = vweird.f32 %v822
    %vm830 = vmor %vm828, %vm829
    %v831 = vsel %vm830, %v822, %v827
    %v832 = vrsqrt.pop %v806
    %v833 = vmul.f32 %v832, %v806
    %v834 = vmul.f32 %v833, %v832
    %v835 = vmul.f32 0.5, %v834
    %v836 = vsub.f32 1.5, %v835
    %v837 = vmul.f32 %v832, %v836
    %vm838 = vweird.f32 %v806
    %vm839 = vweird.f32 %v832
    %vm840 = vmor %vm838, %vm839
    %v841 = vsel %vm840, %v832, %v837
    %v842 = vrsqrt.pop %v807
    %v843 = vmul.f32 %v842, %v807
    %v844 = vmul.f32 %v843, %v842
    %v845 = vmul.f32 0.5, %v844
    %v846 = vsub.f32 1.5, %v845
    %v847 = vmul.f32 %v842, %v846
    %vm848 = vweird.f32 %v807
    %vm849 = vweird.f32 %v842
    %vm850 = vmor %vm848, %vm849
    %v851 = vsel %vm850, %v842, %v847
    %v852 = vrsqrt.pop %v808
    %v853 = vmul.f32 %v852, %v808
    %v854 = vmul.f32 %v853, %v852
    %v855 = vmul.f32 0.5, %v854
    %v856 = vsub.f32 1.5, %v855
    %v857 = vmul.f32 %v852, %v856
    %vm858 = vweird.f32 %v808
    %vm859 = vweird.f32 %v852
    %vm860 = vmor %vm858, %vm859
    %v861 = vsel %vm860, %v852, %v857
    %v862 = vrsqrt.pop %v809
    %v863 = vmul.f32 %v862, %v809
    %v864 = vmul.f32 %v863, %v862
    %v865 = vmul.f32 0.5, %v864
    %v866 = vsub.f32 1.5, %v865
    %v867 = vmul.f32 %v862, %v866
    %vm868 = vweird.f32 %v809
    %vm869 = vweird.f32 %v862
    %vm870 = vmor %vm868, %vm869
    %v871 = vsel %vm870, %v862, %v867
    %v872 = vrsqrt.pop %v810
    %v873 = vmul.f32 %v872, %v810
    %v874 = vmul.f32 %v873, %v872
    %v875 = vmul.f32 0.5, %v874
    %v876 = vsub.f32 1.5, %v875
    %v877 = vmul.f32 %v872, %v876
    %vm878 = vweird.f32 %v810
    %vm879 = vweird.f32 %v872
    %vm880 = vmor %vm878, %vm879
    %v881 = vsel %vm880, %v872, %v877
    %v882 = vrsqrt.pop %v811
    %v883 = vmul.f32 %v882, %v811
    %v884 = vmul.f32 %v883, %v882
    %v885 = vmul.f32 0.5, %v884
    %v886 = vsub.f32 1.5, %v885
    %v887 = vmul.f32 %v882, %v886
    %vm888 = vweird.f32 %v811
    %vm889 = vweird.f32 %v882
    %vm890 = vmor %vm888, %vm889
    %v891 = vsel %vm890, %v882, %v887
    %v900 = vrot.slane %v831, 4
    %v901 = vrot.slane %v851, 4
    %v902 = vrot.slane %v871, 4
    %v903 = vrot.slane %v891, 4
    %v904 = vsel %vm142, %v821, %v900
    %v905 = vsel %vm142, %v841, %v901
    %v906 = vsel %vm142, %v861, %v902
    %v907 = vsel %vm142, %v881, %v903
    %v912 = vmul.f32 %v707, %v904
    %v913 = vmul.f32 %v709, %v905
    %v914 = vmul.f32 %v710, %v906
    %v915 = vmul.f32 %v712, %v907
    %920 = vst [vmem:[#allocation1] ss:$2 sm:$0xff] %v912
    %s921 = scalar_lea.vmem [#allocation1], 1
    %922 = vst [vmem:[%s921] ss:$2 sm:$0xff] %v913
    %s923 = scalar_lea.vmem [#allocation1], 16
    %924 = vst [vmem:[%s923] ss:$2 sm:$0xff] %v914
    %s925 = scalar_lea.vmem [#allocation1], 17
    %926 = vst [vmem:[%s925] ss:$2 sm:$0xff] %v915
    %v927 = vld.sshfl [vmem:[#allocation1] sm:$0xff pattern:$0x75316420]
    %v928 = vld.sshfl [vmem:[#allocation1 + $0x8] sm:$0xff pattern:$0x75316420]
    %v929 = vld.sshfl [vmem:[#allocation1 + $0x10] sm:$0xff pattern:$0x75316420]
    %v930 = vld.sshfl [vmem:[#allocation1 + $0x18] sm:$0xff pattern:$0x75316420]
    %935 = vst [vmem:[#allocation7] sm:$0xff] %v927
    %936 = vst [vmem:[#allocation7 + $0x8] sm:$0xff] %v928
    %937 = vst [vmem:[#allocation7 + $0x10] sm:$0xff] %v929
    %938 = vst [vmem:[#allocation7 + $0x18] sm:$0xff] %v930
    // Predicated region
    $region18: #{tpu_custom_call.1} parent=1 // pred_check
      _
    $region19: #{tpu_custom_call.1} parent=1 // pred_check_branch
      %940 = sbr.rel (0) target = $region21
    $region20: #{tpu_custom_call.1} parent=1 // pred_region
      %942 = vsyncadd [#allocation4], 0
      %s943 = sshll.u32 [#allocation7], 4
      %s944 = int_to_ptr.vmem [resolvable:$true] %s943
      %s945 = sshll.u32 %s2, 4
      %s946 = int_to_ptr.hbm [resolvable:$true] %s945
      %951 = dma.vmem_to_hbm [thread:$0]  %s944, 512, %s946, [#allocation4], 256, 256, 16
    $region21: #{tpu_custom_call.1} parent=1 // pred_fallthru
      _
    // Predicated region
    $region22: #{tpu_custom_call.1} parent=1 // pred_check
      _
    $region23: #{tpu_custom_call.1} parent=1 // pred_check_branch
      %953 = sbr.rel (0) target = $region25
    $region24: #{tpu_custom_call.1} parent=1 // pred_region
      %955 = dma.done [#allocation4], 512
    $region25: #{tpu_custom_call.1} parent=1 // pred_fallthru
      _
    %956 = vsyncpa [#allocation3], 1
    %957 = vsyncpa [#allocation6], 1
    %958 = vsyncpa [#allocation4], 1

</llo_original>
